<compile_context>
chip_gen: v5e
topology: v5e:2x2
jax: 0.10.0
libtpu: 0.0.40
codegen_flags: <defaults>
</compile_context>

<pallas_src>
import numpy as np

import jax
import jax.numpy as jnp
from jax.experimental import pallas as pl
from jax.experimental.pallas import tpu as pltpu

_PROJ_DIM = 128            # nn.Linear(*, 128)
_NORM_EPS = 1e-12          # F.normalize default eps
_NORM_EPS_SQ = _NORM_EPS * _NORM_EPS
_VMEM_BUDGET = 20 << 20    # conservative: safe under v7x's 32 MiB scoped default


def _round_up(x, m):
    return ((x + m - 1) // m) * m


def _make_pair_selector(num_pairs, n_out):
    """Block-diagonal [num_pairs*128, n_out] f32 selector.  Column p sums the
    p-th 128-wide slice of the lane-concatenated pair products, so a single
    MXU matmul performs all P lane reductions and emits a lane-dense
    [tile_b, n_out] block (columns >= P are zero / become sigmoid(0))."""
    rows = np.arange(num_pairs * _PROJ_DIM) // _PROJ_DIM
    cols = np.arange(n_out)
    return jnp.asarray((rows[:, None] == cols[None, :]).astype(np.float32))


def _estimate_vmem_bytes(tile_b, feat_dims, num_pairs, n_out):
    """Rough per-grid-step VMEM footprint: double-buffered pipeline blocks
    plus the main in-kernel f32 temporaries."""
    v = 0
    for f in feat_dims:
        v += 2 * tile_b * f * 4               # activation block (dbl-buffered)
        v += 2 * f * _PROJ_DIM * 4            # resident weight block
        v += 2 * _PROJ_DIM * 4                # bias
    v += 2 * num_pairs * _PROJ_DIM * n_out * 4    # selector
    v += 2 * tile_b * n_out * 4                   # output block
    # live temporaries: S+T normalized projections + concatenated products
    v += (len(feat_dims) + 2 * num_pairs) * tile_b * _PROJ_DIM * 4
    return v


def _pick_batch_tile(batch, feat_dims, num_pairs, n_out):
    """Largest batch tile (multiple of 8, dividing B) that fits the VMEM
    budget, preferring >=2 grid steps so v7x's two TensorCores share work."""
    if batch % 8 != 0:
        return batch                           # full dim is always a legal block
    cands = sorted(
        {t for t in range(8, min(batch, 256) + 1, 8) if batch % t == 0},
        reverse=True)
    fitting = [t for t in cands
               if _estimate_vmem_bytes(t, feat_dims, num_pairs, n_out)
               <= _VMEM_BUDGET] or [min(cands)]
    multi = [t for t in fitting if batch // t >= 2]
    return max(multi) if multi else max(fitting)


# --------------------------------------------------------------------------
# Fused kernel: all projections + normalize + all-pair similarity + sigmoid
# --------------------------------------------------------------------------
def _make_fused_kernel(num_s, num_t, matmul_dtype):
    def kernel(*refs):
        out_ref = refs[-1]
        sel_ref = refs[-2]
        branch_refs = refs[:-2]

        def project(idx):
            x_ref, w_ref, b_ref = branch_refs[3 * idx: 3 * idx + 3]
            x = x_ref[...]
            w = w_ref[...]
            if matmul_dtype is not None:
                x = x.astype(matmul_dtype)
                w = w.astype(matmul_dtype)
            y = jnp.dot(x, w, preferred_element_type=jnp.float32)
            y = y + b_ref[...].astype(jnp.float32)            # [tile_b, 128]
            ss = jnp.sum(y * y, axis=-1, keepdims=True)       # [tile_b, 1]
            inv = jax.lax.rsqrt(jnp.maximum(ss, _NORM_EPS_SQ))
            return y * inv                                    # L2-normalized

        s_f = [project(i) for i in range(num_s)]
        t_f = [project(num_s + j) for j in range(num_t)]

        # All-pair elementwise products (VPU), lane-concatenated, then a single
        # MXU matmul against the block-diagonal selector does every 128->1
        # reduction and lays the P results out along lanes (lane-dense store).
        prods = [s_f[k] * t_f[z] for k in range(num_s) for z in range(num_t)]
        prod_cat = prods[0] if len(prods) == 1 else jnp.concatenate(prods, axis=-1)
        sims = jnp.dot(prod_cat, sel_ref[...],
                       preferred_element_type=jnp.float32)    # [tile_b, n_out]
        out_ref[...] = jax.nn.sigmoid(sims).astype(out_ref.dtype)

    return kernel


def loss_weight_network_forward(s_feats, t_feats, s_params, t_params,
                                *, matmul_dtype=None):
    """s_params/t_params: lists of (W [F_i, 128], b [128]).  Returns the list
    of per-pair [B] sigmoid similarity weights, same ordering as PyTorch
    (for k in s: for z in t)."""
    num_s, num_t = len(s_feats), len(t_feats)
    num_pairs = num_s * num_t
    n_out = max(_PROJ_DIM, _round_up(num_pairs, _PROJ_DIM))

    batch = s_feats[0].shape[0]
    feats = list(s_feats) + list(t_feats)
    params = list(s_params) + list(t_params)
    feat_dims = [x.shape[1] for x in feats]
    for x, (w, b) in zip(feats, params):
        assert x.shape[0] == batch
        assert w.shape == (x.shape[1], _PROJ_DIM) and b.shape == (_PROJ_DIM,)

    tile_b = _pick_batch_tile(batch, feat_dims, num_pairs, n_out)
    grid = (batch // tile_b,)

    sel = _make_pair_selector(num_pairs, n_out)

    operands, in_specs = [], []
    for x, (w, b) in zip(feats, params):
        f = x.shape[1]
        operands += [x, w, b.reshape(1, _PROJ_DIM)]
        in_specs += [
            pl.BlockSpec((tile_b, f), lambda i: (i, 0)),            # streamed
            pl.BlockSpec((f, _PROJ_DIM), lambda i: (0, 0)),         # resident
            pl.BlockSpec((1, _PROJ_DIM), lambda i: (0, 0)),         # resident
        ]
    operands.append(sel)
    in_specs.append(
        pl.BlockSpec((num_pairs * _PROJ_DIM, n_out), lambda i: (0, 0)))

    vmem_est = _estimate_vmem_bytes(tile_b, feat_dims, num_pairs, n_out)
    vmem_limit = min(64 << 20, max(32 << 20, 2 * vmem_est))

    out = pl.pallas_call(
        _make_fused_kernel(num_s, num_t, matmul_dtype),
        out_shape=jax.ShapeDtypeStruct((batch, n_out), jnp.float32),
        grid_spec=pltpu.PrefetchScalarGridSpec(
            num_scalar_prefetch=0,
            grid=grid,
            in_specs=in_specs,
            out_specs=pl.BlockSpec((tile_b, n_out), lambda i: (i, 0)),
        ),
        compiler_params=pltpu.CompilerParams(
            dimension_semantics=("parallel",),
            vmem_limit_bytes=vmem_limit,
        ),
    )(*operands)

    # Slice the lane-dense [B, n_out] slab back into the per-pair [B] list.
    return [out[:, k * num_t + z]
            for k in range(num_s) for z in range(num_t)]


# --------------------------------------------------------------------------
# Pure-JAX reference (numerical parity with the PyTorch module)
# --------------------------------------------------------------------------
def _reference_forward(s_feats, t_feats, s_params, t_params):
    def proj_norm(x, w, b):
        y = x.astype(jnp.float32) @ w.astype(jnp.float32) + b.astype(jnp.float32)
        n = jnp.maximum(jnp.sqrt(jnp.sum(y * y, axis=1, keepdims=True)), _NORM_EPS)
        return y / n

    sp = [proj_norm(x, w, b) for x, (w, b) in zip(s_feats, s_params)]
    tp = [proj_norm(x, w, b) for x, (w, b) in zip(t_feats, t_params)]
    outs = []
    for fa in sp:
        for fb in tp:
            outs.append(jax.nn.sigmoid(jnp.sum(fa * fb, axis=1)))
    return outs


if __name__ == "__main__":
    B = 8
    s_feat_num = [32, 64]
    t_feat_num = [48, 16]

    key = jax.random.PRNGKey(0)
    keys = iter(jax.random.split(key, 3 * (len(s_feat_num) + len(t_feat_num))))

    def make_branch(feat_dims):
        feats, params = [], []
        for f in feat_dims:
            feats.append(jax.random.normal(next(keys), (B, f), jnp.float32))
            w = jax.random.normal(next(keys), (f, _PROJ_DIM), jnp.float32)
            w = w * (1.0 / jnp.sqrt(jnp.float32(f)))
            bb = 0.01 * jax.random.normal(next(keys), (_PROJ_DIM,), jnp.float32)
            params.append((w, bb))
        return feats, params

    s_feats, s_params = make_branch(s_feat_num)
    t_feats, t_params = make_branch(t_feat_num)

    weights = loss_weight_network_forward(s_feats, t_feats, s_params, t_params)
    for w_out in weights:
        jax.block_until_ready(w_out)

    ref = _reference_forward(s_feats, t_feats, s_params, t_params)
    for w_out, r_out in zip(weights, ref):
        np.testing.assert_allclose(
            np.asarray(w_out), np.asarray(r_out), atol=5e-3, rtol=5e-3
        )

    print("KERNEL_OK")
</pallas_src>

<mosaic_0001>
module attributes {stable_mosaic.version = 11 : i64} {
  func.func @kernel(%arg0: i32, %arg1: memref<8x32xf32, #tpu.memory_space<vmem>>, %arg2: memref<32x128xf32, #tpu.memory_space<vmem>>, %arg3: memref<1x128xf32, #tpu.memory_space<vmem>>, %arg4: memref<8x64xf32, #tpu.memory_space<vmem>>, %arg5: memref<64x128xf32, #tpu.memory_space<vmem>>, %arg6: memref<1x128xf32, #tpu.memory_space<vmem>>, %arg7: memref<8x48xf32, #tpu.memory_space<vmem>>, %arg8: memref<48x128xf32, #tpu.memory_space<vmem>>, %arg9: memref<1x128xf32, #tpu.memory_space<vmem>>, %arg10: memref<8x16xf32, #tpu.memory_space<vmem>>, %arg11: memref<16x128xf32, #tpu.memory_space<vmem>>, %arg12: memref<1x128xf32, #tpu.memory_space<vmem>>, %arg13: memref<512x128xf32, #tpu.memory_space<vmem>>, %arg14: memref<8x128xf32, #tpu.memory_space<vmem>>) attributes {dimension_semantics = [#tpu.dimension_semantics<parallel>], iteration_bounds = array<i64: 1>, scalar_prefetch = 0 : i64, scratch_operands = 0 : i64, tpu.core_type = #tpu.core_type<tc>, window_params = [{transform_indices = @transform_0, window_bounds = array<i64: 8, 32>}, {pipeline_mode = #tpu.pipeline_mode<synchronous>, transform_indices = @transform_1, window_bounds = array<i64: 32, 128>}, {pipeline_mode = #tpu.pipeline_mode<synchronous>, transform_indices = @transform_2, window_bounds = array<i64: 1, 128>}, {transform_indices = @transform_3, window_bounds = array<i64: 8, 64>}, {pipeline_mode = #tpu.pipeline_mode<synchronous>, transform_indices = @transform_4, window_bounds = array<i64: 64, 128>}, {pipeline_mode = #tpu.pipeline_mode<synchronous>, transform_indices = @transform_5, window_bounds = array<i64: 1, 128>}, {transform_indices = @transform_6, window_bounds = array<i64: 8, 48>}, {pipeline_mode = #tpu.pipeline_mode<synchronous>, transform_indices = @transform_7, window_bounds = array<i64: 48, 128>}, {pipeline_mode = #tpu.pipeline_mode<synchronous>, transform_indices = @transform_8, window_bounds = array<i64: 1, 128>}, {transform_indices = @transform_9, window_bounds = array<i64: 8, 16>}, {pipeline_mode = #tpu.pipeline_mode<synchronous>, transform_indices = @transform_10, window_bounds = array<i64: 16, 128>}, {pipeline_mode = #tpu.pipeline_mode<synchronous>, transform_indices = @transform_11, window_bounds = array<i64: 1, 128>}, {pipeline_mode = #tpu.pipeline_mode<synchronous>, transform_indices = @transform_12, window_bounds = array<i64: 512, 128>}, {transform_indices = @transform_13, window_bounds = array<i64: 8, 128>}]} {
    %c0 = arith.constant 0 : index
    %c0_0 = arith.constant 0 : index
    %0 = vector.load %arg1[%c0, %c0_0] : memref<8x32xf32, #tpu.memory_space<vmem>>, vector<8x32xf32>
    %c0_1 = arith.constant 0 : index
    %c0_2 = arith.constant 0 : index
    %1 = vector.load %arg2[%c0_1, %c0_2] : memref<32x128xf32, #tpu.memory_space<vmem>>, vector<32x128xf32>
    %cst = arith.constant dense<0.000000e+00> : vector<8x128xf32>
    %2 = tpu.matmul %0, %1, %cst {dimension_numbers = #tpu.dot_dimension_numbers<[1], [0], [0], [1], [0, 0, 1, 1], [], []>} : vector<8x32xf32>, vector<32x128xf32>, vector<8x128xf32> -> vector<8x128xf32>
    %c0_3 = arith.constant 0 : index
    %c0_4 = arith.constant 0 : index
    %3 = vector.load %arg3[%c0_3, %c0_4] : memref<1x128xf32, #tpu.memory_space<vmem>>, vector<1x128xf32>
    %4 = vector.broadcast %3 : vector<1x128xf32> to vector<8x128xf32>
    %5 = arith.addf %2, %4 : vector<8x128xf32>
    %6 = arith.mulf %5, %5 : vector<8x128xf32>
    %cst_5 = arith.constant dense<0.000000e+00> : vector<8xf32>
    %7 = vector.multi_reduction <add>, %6, %cst_5 [1] : vector<8x128xf32> to vector<8xf32>
    %8 = vector.shape_cast %7 : vector<8xf32> to vector<8x1xf32>
    %cst_6 = arith.constant 1.000000e-24 : f32
    %9 = vector.broadcast %cst_6 : f32 to vector<8x1xf32>
    %10 = arith.maximumf %8, %9 : vector<8x1xf32>
    %11 = math.rsqrt %10 : vector<8x1xf32>
    %12 = vector.broadcast %11 : vector<8x1xf32> to vector<8x128xf32>
    %13 = arith.mulf %5, %12 : vector<8x128xf32>
    %c0_7 = arith.constant 0 : index
    %c0_8 = arith.constant 0 : index
    %14 = vector.load %arg4[%c0_7, %c0_8] : memref<8x64xf32, #tpu.memory_space<vmem>>, vector<8x64xf32>
    %c0_9 = arith.constant 0 : index
    %c0_10 = arith.constant 0 : index
    %15 = vector.load %arg5[%c0_9, %c0_10] : memref<64x128xf32, #tpu.memory_space<vmem>>, vector<64x128xf32>
    %cst_11 = arith.constant dense<0.000000e+00> : vector<8x128xf32>
    %16 = tpu.matmul %14, %15, %cst_11 {dimension_numbers = #tpu.dot_dimension_numbers<[1], [0], [0], [1], [0, 0, 1, 1], [], []>} : vector<8x64xf32>, vector<64x128xf32>, vector<8x128xf32> -> vector<8x128xf32>
    %c0_12 = arith.constant 0 : index
    %c0_13 = arith.constant 0 : index
    %17 = vector.load %arg6[%c0_12, %c0_13] : memref<1x128xf32, #tpu.memory_space<vmem>>, vector<1x128xf32>
    %18 = vector.broadcast %17 : vector<1x128xf32> to vector<8x128xf32>
    %19 = arith.addf %16, %18 : vector<8x128xf32>
    %20 = arith.mulf %19, %19 : vector<8x128xf32>
    %cst_14 = arith.constant dense<0.000000e+00> : vector<8xf32>
    %21 = vector.multi_reduction <add>, %20, %cst_14 [1] : vector<8x128xf32> to vector<8xf32>
    %22 = vector.shape_cast %21 : vector<8xf32> to vector<8x1xf32>
    %cst_15 = arith.constant 1.000000e-24 : f32
    %23 = vector.broadcast %cst_15 : f32 to vector<8x1xf32>
    %24 = arith.maximumf %22, %23 : vector<8x1xf32>
    %25 = math.rsqrt %24 : vector<8x1xf32>
    %26 = vector.broadcast %25 : vector<8x1xf32> to vector<8x128xf32>
    %27 = arith.mulf %19, %26 : vector<8x128xf32>
    %c0_16 = arith.constant 0 : index
    %c0_17 = arith.constant 0 : index
    %28 = vector.load %arg7[%c0_16, %c0_17] : memref<8x48xf32, #tpu.memory_space<vmem>>, vector<8x48xf32>
    %c0_18 = arith.constant 0 : index
    %c0_19 = arith.constant 0 : index
    %29 = vector.load %arg8[%c0_18, %c0_19] : memref<48x128xf32, #tpu.memory_space<vmem>>, vector<48x128xf32>
    %cst_20 = arith.constant dense<0.000000e+00> : vector<8x128xf32>
    %30 = tpu.matmul %28, %29, %cst_20 {dimension_numbers = #tpu.dot_dimension_numbers<[1], [0], [0], [1], [0, 0, 1, 1], [], []>} : vector<8x48xf32>, vector<48x128xf32>, vector<8x128xf32> -> vector<8x128xf32>
    %c0_21 = arith.constant 0 : index
    %c0_22 = arith.constant 0 : index
    %31 = vector.load %arg9[%c0_21, %c0_22] : memref<1x128xf32, #tpu.memory_space<vmem>>, vector<1x128xf32>
    %32 = vector.broadcast %31 : vector<1x128xf32> to vector<8x128xf32>
    %33 = arith.addf %30, %32 : vector<8x128xf32>
    %34 = arith.mulf %33, %33 : vector<8x128xf32>
    %cst_23 = arith.constant dense<0.000000e+00> : vector<8xf32>
    %35 = vector.multi_reduction <add>, %34, %cst_23 [1] : vector<8x128xf32> to vector<8xf32>
    %36 = vector.shape_cast %35 : vector<8xf32> to vector<8x1xf32>
    %cst_24 = arith.constant 1.000000e-24 : f32
    %37 = vector.broadcast %cst_24 : f32 to vector<8x1xf32>
    %38 = arith.maximumf %36, %37 : vector<8x1xf32>
    %39 = math.rsqrt %38 : vector<8x1xf32>
    %40 = vector.broadcast %39 : vector<8x1xf32> to vector<8x128xf32>
    %41 = arith.mulf %33, %40 : vector<8x128xf32>
    %c0_25 = arith.constant 0 : index
    %c0_26 = arith.constant 0 : index
    %42 = vector.load %arg10[%c0_25, %c0_26] : memref<8x16xf32, #tpu.memory_space<vmem>>, vector<8x16xf32>
    %c0_27 = arith.constant 0 : index
    %c0_28 = arith.constant 0 : index
    %43 = vector.load %arg11[%c0_27, %c0_28] : memref<16x128xf32, #tpu.memory_space<vmem>>, vector<16x128xf32>
    %cst_29 = arith.constant dense<0.000000e+00> : vector<8x128xf32>
    %44 = tpu.matmul %42, %43, %cst_29 {dimension_numbers = #tpu.dot_dimension_numbers<[1], [0], [0], [1], [0, 0, 1, 1], [], []>} : vector<8x16xf32>, vector<16x128xf32>, vector<8x128xf32> -> vector<8x128xf32>
    %c0_30 = arith.constant 0 : index
    %c0_31 = arith.constant 0 : index
    %45 = vector.load %arg12[%c0_30, %c0_31] : memref<1x128xf32, #tpu.memory_space<vmem>>, vector<1x128xf32>
    %46 = vector.broadcast %45 : vector<1x128xf32> to vector<8x128xf32>
    %47 = arith.addf %44, %46 : vector<8x128xf32>
    %48 = arith.mulf %47, %47 : vector<8x128xf32>
    %cst_32 = arith.constant dense<0.000000e+00> : vector<8xf32>
    %49 = vector.multi_reduction <add>, %48, %cst_32 [1] : vector<8x128xf32> to vector<8xf32>
    %50 = vector.shape_cast %49 : vector<8xf32> to vector<8x1xf32>
    %cst_33 = arith.constant 1.000000e-24 : f32
    %51 = vector.broadcast %cst_33 : f32 to vector<8x1xf32>
    %52 = arith.maximumf %50, %51 : vector<8x1xf32>
    %53 = math.rsqrt %52 : vector<8x1xf32>
    %54 = vector.broadcast %53 : vector<8x1xf32> to vector<8x128xf32>
    %55 = arith.mulf %47, %54 : vector<8x128xf32>
    %56 = arith.mulf %13, %41 : vector<8x128xf32>
    %57 = arith.mulf %13, %55 : vector<8x128xf32>
    %58 = arith.mulf %27, %41 : vector<8x128xf32>
    %59 = arith.mulf %27, %55 : vector<8x128xf32>
    %60 = tpu.concatenate %56, %57, %58, %59 in 1 : vector<8x128xf32>, vector<8x128xf32>, vector<8x128xf32>, vector<8x128xf32> -> vector<8x512xf32>
    %c0_34 = arith.constant 0 : index
    %c0_35 = arith.constant 0 : index
    %61 = vector.load %arg13[%c0_34, %c0_35] : memref<512x128xf32, #tpu.memory_space<vmem>>, vector<512x128xf32>
    %cst_36 = arith.constant dense<0.000000e+00> : vector<8x128xf32>
    %62 = tpu.matmul %60, %61, %cst_36 {dimension_numbers = #tpu.dot_dimension_numbers<[1], [0], [0], [1], [0, 0, 1, 1], [], []>} : vector<8x512xf32>, vector<512x128xf32>, vector<8x128xf32> -> vector<8x128xf32>
    %63 = arith.negf %62 : vector<8x128xf32>
    %64 = math.exp %63 : vector<8x128xf32>
    %cst_37 = arith.constant 1.000000e+00 : f32
    %65 = vector.broadcast %cst_37 : f32 to vector<8x128xf32>
    %66 = arith.addf %65, %64 : vector<8x128xf32>
    %67 = arith.divf %65, %66 : vector<8x128xf32>
    %c0_38 = arith.constant 0 : index
    %c0_39 = arith.constant 0 : index
    %68 = vector.load %arg14[%c0_38, %c0_39] : memref<8x128xf32, #tpu.memory_space<vmem>>, vector<8x128xf32>
    tpu.vector_store %arg14[%c0_38, %c0_39], %67 {strides = array<i32>} : memref<8x128xf32, #tpu.memory_space<vmem>>, vector<8x128xf32>,
    return
  }
  func.func @transform_0(%arg0: i32) -> (i32, i32) {
    %c0_i32 = arith.constant 0 : i32
    %c0_i32_0 = arith.constant 0 : i32
    return %arg0, %c0_i32 : i32, i32
  }
  func.func @transform_1(%arg0: i32) -> (i32, i32) {
    %c0_i32 = arith.constant 0 : i32
    %c0_i32_0 = arith.constant 0 : i32
    %c0_i32_1 = arith.constant 0 : i32
    return %c0_i32, %c0_i32_0 : i32, i32
  }
  func.func @transform_2(%arg0: i32) -> (i32, i32) {
    %c0_i32 = arith.constant 0 : i32
    %c0_i32_0 = arith.constant 0 : i32
    %c0_i32_1 = arith.constant 0 : i32
    return %c0_i32, %c0_i32_0 : i32, i32
  }
  func.func @transform_3(%arg0: i32) -> (i32, i32) {
    %c0_i32 = arith.constant 0 : i32
    %c0_i32_0 = arith.constant 0 : i32
    return %arg0, %c0_i32 : i32, i32
  }
  func.func @transform_4(%arg0: i32) -> (i32, i32) {
    %c0_i32 = arith.constant 0 : i32
    %c0_i32_0 = arith.constant 0 : i32
    %c0_i32_1 = arith.constant 0 : i32
    return %c0_i32, %c0_i32_0 : i32, i32
  }
  func.func @transform_5(%arg0: i32) -> (i32, i32) {
    %c0_i32 = arith.constant 0 : i32
    %c0_i32_0 = arith.constant 0 : i32
    %c0_i32_1 = arith.constant 0 : i32
    return %c0_i32, %c0_i32_0 : i32, i32
  }
  func.func @transform_6(%arg0: i32) -> (i32, i32) {
    %c0_i32 = arith.constant 0 : i32
    %c0_i32_0 = arith.constant 0 : i32
    return %arg0, %c0_i32 : i32, i32
  }
  func.func @transform_7(%arg0: i32) -> (i32, i32) {
    %c0_i32 = arith.constant 0 : i32
    %c0_i32_0 = arith.constant 0 : i32
    %c0_i32_1 = arith.constant 0 : i32
    return %c0_i32, %c0_i32_0 : i32, i32
  }
  func.func @transform_8(%arg0: i32) -> (i32, i32) {
    %c0_i32 = arith.constant 0 : i32
    %c0_i32_0 = arith.constant 0 : i32
    %c0_i32_1 = arith.constant 0 : i32
    return %c0_i32, %c0_i32_0 : i32, i32
  }
  func.func @transform_9(%arg0: i32) -> (i32, i32) {
    %c0_i32 = arith.constant 0 : i32
    %c0_i32_0 = arith.constant 0 : i32
    return %arg0, %c0_i32 : i32, i32
  }
  func.func @transform_10(%arg0: i32) -> (i32, i32) {
    %c0_i32 = arith.constant 0 : i32
    %c0_i32_0 = arith.constant 0 : i32
    %c0_i32_1 = arith.constant 0 : i32
    return %c0_i32, %c0_i32_0 : i32, i32
  }
  func.func @transform_11(%arg0: i32) -> (i32, i32) {
    %c0_i32 = arith.constant 0 : i32
    %c0_i32_0 = arith.constant 0 : i32
    %c0_i32_1 = arith.constant 0 : i32
    return %c0_i32, %c0_i32_0 : i32, i32
  }
  func.func @transform_12(%arg0: i32) -> (i32, i32) {
    %c0_i32 = arith.constant 0 : i32
    %c0_i32_0 = arith.constant 0 : i32
    %c0_i32_1 = arith.constant 0 : i32
    return %c0_i32, %c0_i32_0 : i32, i32
  }
  func.func @transform_13(%arg0: i32) -> (i32, i32) {
    %c0_i32 = arith.constant 0 : i32
    %c0_i32_0 = arith.constant 0 : i32
    return %arg0, %c0_i32 : i32, i32
  }
}

</mosaic_0001>

<llo_original>
// kernel: tpu_custom_call.1
$region0: #{tpu_custom_call.1}
  #allocation0 [shape = 'u32[]', space=smem, size = 0x4, offset = 0x4, fixed_abs, tag = 'smem constant byte address 0x4 - core index']
  #allocation1 [shape = 'u32[72,128]{1,0:T(1,128)}', space=vmem, size = 0x9000, scoped, tag = 'internal scratch']
  %s0 = inlined_call_operand.hbm [shape: f32[8,32], index: 0, kind: input, shape index: {}]
  %s1 = inlined_call_operand.hbm [shape: f32[32,128], index: 1, kind: input, shape index: {}]
  %s2 = inlined_call_operand.hbm [shape: f32[1,128], index: 2, kind: input, shape index: {}]
  %s3 = inlined_call_operand.hbm [shape: f32[8,64], index: 3, kind: input, shape index: {}]
  %s4 = inlined_call_operand.hbm [shape: f32[64,128], index: 4, kind: input, shape index: {}]
  %s5 = inlined_call_operand.hbm [shape: f32[1,128], index: 5, kind: input, shape index: {}]
  %s6 = inlined_call_operand.hbm [shape: f32[8,48], index: 6, kind: input, shape index: {}]
  %s7 = inlined_call_operand.hbm [shape: f32[48,128], index: 7, kind: input, shape index: {}]
  %s8 = inlined_call_operand.hbm [shape: f32[1,128], index: 8, kind: input, shape index: {}]
  %s9 = inlined_call_operand.vmem [shape: f32[8,16], index: 9, kind: input, shape index: {}]
  %s10 = inlined_call_operand.hbm [shape: f32[16,128], index: 10, kind: input, shape index: {}]
  %s11 = inlined_call_operand.vmem [shape: f32[1,128], index: 11, kind: input, shape index: {}]
  %s12 = inlined_call_operand.hbm [shape: f32[512,128], index: 12, kind: input, shape index: {}]
  %s13 = inlined_call_operand.hbm [shape: f32[8,128], index: 13, kind: output, shape index: {}]
  %s14 = sld [smem:[#allocation0]]
  $region106: #{tpu_custom_call.1} parent=0
    _
  %s16 = ssub.s32 1, %s14
  %s17 = scalar_select 0, %s16, %s14
  $region1: #{tpu_custom_call.1} parent=0
    #allocation2 [shape = 'u8[4096]{0}', space=vmem, size = 0x1000, scoped, tag = 'input window, operand 0, single buffered']
    #allocation3 [shape = 's32[1]{0}', space=sflag, size = 0x4, scoped, tag = 'scoped memory for tpu_custom_call.1']
    #allocation4 [shape = 's32[1]{0}', space=sflag, size = 0x4, scoped, tag = 'scoped memory for tpu_custom_call.1']
    #allocation5 [shape = 'u8[16384]{0}', space=vmem, size = 0x4000, scoped, tag = 'input window, operand 1, single buffered']
    #allocation6 [shape = 's32[1]{0}', space=sflag, size = 0x4, scoped, tag = 'scoped memory for tpu_custom_call.1']
    #allocation7 [shape = 'u8[512]{0}', space=vmem, size = 0x400, scoped, tag = 'input window, operand 2, single buffered']
    #allocation8 [shape = 'u8[4096]{0}', space=vmem, size = 0x1000, scoped, tag = 'input window, operand 3, single buffered']
    #allocation9 [shape = 's32[1]{0}', space=sflag, size = 0x4, scoped, tag = 'scoped memory for tpu_custom_call.1']
    #allocation10 [shape = 'u8[32768]{0}', space=vmem, size = 0x8000, scoped, tag = 'input window, operand 4, single buffered']
    #allocation11 [shape = 'u8[512]{0}', space=vmem, size = 0x400, scoped, tag = 'input window, operand 5, single buffered']
    #allocation12 [shape = 's32[1]{0}', space=sflag, size = 0x4, scoped, tag = 'scoped memory for tpu_custom_call.1']
    #allocation13 [shape = 'u8[4096]{0}', space=vmem, size = 0x1000, scoped, tag = 'input window, operand 6, single buffered']
    #allocation14 [shape = 'u8[24576]{0}', space=vmem, size = 0x6000, scoped, tag = 'input window, operand 7, single buffered']
    #allocation15 [shape = 's32[1]{0}', space=sflag, size = 0x4, scoped, tag = 'scoped memory for tpu_custom_call.1']
    #allocation16 [shape = 'u8[512]{0}', space=vmem, size = 0x400, scoped, tag = 'input window, operand 8, single buffered']
    #allocation17 [shape = 'u8[8192]{0}', space=vmem, size = 0x2000, scoped, tag = 'input window, operand 10, single buffered']
    #allocation18 [shape = 's32[1]{0}', space=sflag, size = 0x4, scoped, tag = 'scoped memory for tpu_custom_call.1']
    #allocation19 [shape = 'u8[262144]{0}', space=vmem, size = 0x40000, scoped, tag = 'input window, operand 12, single buffered']
    #allocation20 [shape = 'u8[4096]{0}', space=vmem, size = 0x1000, scoped, tag = 'output window, operand 0, single buffered']
    %18 = vsyncpa [#allocation3], 0
    %19 = vsyncpa [#allocation6], 0
    %20 = vsyncpa [#allocation9], 0
    %21 = vsyncpa [#allocation12], 0
    %22 = vsyncpa [#allocation15], 0
    %23 = vsyncpa [#allocation18], 0
    %24 = vsyncpa [#allocation4], 0
    // Predicated region
    $region2: #{tpu_custom_call.1} parent=1 // pred_check
      _
    $region3: #{tpu_custom_call.1} parent=1 // pred_check_branch
      %26 = sbr.rel (0) target = $region5
    $region4: #{tpu_custom_call.1} parent=1 // pred_region
      %28 = vsyncadd [#allocation3], 0
      %s30 = sshll.u32 %s0, 4
      %s31 = int_to_ptr.hbm [resolvable:$true] %s30
      %s32 = sshll.u32 [#allocation2], 4
      %s33 = int_to_ptr.vmem [resolvable:$true] %s32
      %35 = dma.hbm_to_vmem [thread:$0]  %s31, 128, %s33, [#allocation3]
    $region5: #{tpu_custom_call.1} parent=1 // pred_fallthru
      _
    // Predicated region
    $region6: #{tpu_custom_call.1} parent=1 // pred_check
      _
    $region7: #{tpu_custom_call.1} parent=1 // pred_check_branch
      %37 = sbr.rel (0) target = $region9
    $region8: #{tpu_custom_call.1} parent=1 // pred_region
      %39 = vsyncadd [#allocation6], 0
      %s40 = sshll.u32 %s1, 4
      %s41 = int_to_ptr.hbm [resolvable:$true] %s40
      %s42 = sshll.u32 [#allocation5], 4
      %s43 = int_to_ptr.vmem [resolvable:$true] %s42
      %48 = dma.hbm_to_vmem [thread:$0]  %s41, 512, %s43, [#allocation6], 128, 128, 8
    $region9: #{tpu_custom_call.1} parent=1 // pred_fallthru
      _
    // Predicated region
    $region10: #{tpu_custom_call.1} parent=1 // pred_check
      _
    $region11: #{tpu_custom_call.1} parent=1 // pred_check_branch
      %50 = sbr.rel (0) target = $region13
    $region12: #{tpu_custom_call.1} parent=1 // pred_region
      %52 = vsyncadd [#allocation6], 0
      %s54 = sshll.u32 %s2, 4
      %s55 = int_to_ptr.hbm [resolvable:$true] %s54
      %s56 = sshll.u32 [#allocation7], 4
      %s57 = int_to_ptr.vmem [resolvable:$true] %s56
      %59 = dma.hbm_to_vmem [thread:$0]  %s55, 16, %s57, [#allocation6]
    $region13: #{tpu_custom_call.1} parent=1 // pred_fallthru
      _
    // Predicated region
    $region14: #{tpu_custom_call.1} parent=1 // pred_check
      _
    $region15: #{tpu_custom_call.1} parent=1 // pred_check_branch
      %61 = sbr.rel (0) target = $region17
    $region16: #{tpu_custom_call.1} parent=1 // pred_region
      %63 = vsyncadd [#allocation9], 0
      %s65 = sshll.u32 %s3, 4
      %s66 = int_to_ptr.hbm [resolvable:$true] %s65
      %s67 = sshll.u32 [#allocation8], 4
      %s68 = int_to_ptr.vmem [resolvable:$true] %s67
      %70 = dma.hbm_to_vmem [thread:$0]  %s66, 128, %s68, [#allocation9]
    $region17: #{tpu_custom_call.1} parent=1 // pred_fallthru
      _
    // Predicated region
    $region18: #{tpu_custom_call.1} parent=1 // pred_check
      _
    $region19: #{tpu_custom_call.1} parent=1 // pred_check_branch
      %72 = sbr.rel (0) target = $region21
    $region20: #{tpu_custom_call.1} parent=1 // pred_region
      %74 = vsyncadd [#allocation9], 0
      %s75 = sshll.u32 %s4, 4
      %s76 = int_to_ptr.hbm [resolvable:$true] %s75
      %s77 = sshll.u32 [#allocation10], 4
      %s78 = int_to_ptr.vmem [resolvable:$true] %s77
      %83 = dma.hbm_to_vmem [thread:$0]  %s76, 1024, %s78, [#allocation9], 128, 128, 8
    $region21: #{tpu_custom_call.1} parent=1 // pred_fallthru
      _
    // Predicated region
    $region22: #{tpu_custom_call.1} parent=1 // pred_check
      _
    $region23: #{tpu_custom_call.1} parent=1 // pred_check_branch
      %85 = sbr.rel (0) target = $region25
    $region24: #{tpu_custom_call.1} parent=1 // pred_region
      %87 = vsyncadd [#allocation12], 0
      %s89 = sshll.u32 %s5, 4
      %s90 = int_to_ptr.hbm [resolvable:$true] %s89
      %s91 = sshll.u32 [#allocation11], 4
      %s92 = int_to_ptr.vmem [resolvable:$true] %s91
      %94 = dma.hbm_to_vmem [thread:$0]  %s90, 16, %s92, [#allocation12]
    $region25: #{tpu_custom_call.1} parent=1 // pred_fallthru
      _
    // Predicated region
    $region26: #{tpu_custom_call.1} parent=1 // pred_check
      _
    $region27: #{tpu_custom_call.1} parent=1 // pred_check_branch
      %96 = sbr.rel (0) target = $region29
    $region28: #{tpu_custom_call.1} parent=1 // pred_region
      %98 = vsyncadd [#allocation12], 0
      %s100 = sshll.u32 %s6, 4
      %s101 = int_to_ptr.hbm [resolvable:$true] %s100
      %s102 = sshll.u32 [#allocation13], 4
      %s103 = int_to_ptr.vmem [resolvable:$true] %s102
      %105 = dma.hbm_to_vmem [thread:$0]  %s101, 128, %s103, [#allocation12]
    $region29: #{tpu_custom_call.1} parent=1 // pred_fallthru
      _
    // Predicated region
    $region30: #{tpu_custom_call.1} parent=1 // pred_check
      _
    $region31: #{tpu_custom_call.1} parent=1 // pred_check_branch
      %107 = sbr.rel (0) target = $region33
    $region32: #{tpu_custom_call.1} parent=1 // pred_region
      %109 = vsyncadd [#allocation15], 0
      %s110 = sshll.u32 %s7, 4
      %s111 = int_to_ptr.hbm [resolvable:$true] %s110
      %s112 = sshll.u32 [#allocation14], 4
      %s113 = int_to_ptr.vmem [resolvable:$true] %s112
      %118 = dma.hbm_to_vmem [thread:$0]  %s111, 768, %s113, [#allocation15], 128, 128, 8
    $region33: #{tpu_custom_call.1} parent=1 // pred_fallthru
      _
    // Predicated region
    $region34: #{tpu_custom_call.1} parent=1 // pred_check
      _
    $region35: #{tpu_custom_call.1} parent=1 // pred_check_branch
      %120 = sbr.rel (0) target = $region37
    $region36: #{tpu_custom_call.1} parent=1 // pred_region
      %122 = vsyncadd [#allocation15], 0
      %s124 = sshll.u32 %s8, 4
      %s125 = int_to_ptr.hbm [resolvable:$true] %s124
      %s126 = sshll.u32 [#allocation16], 4
      %s127 = int_to_ptr.vmem [resolvable:$true] %s126
      %129 = dma.hbm_to_vmem [thread:$0]  %s125, 16, %s127, [#allocation15]
    $region37: #{tpu_custom_call.1} parent=1 // pred_fallthru
      _
    // Predicated region
    $region38: #{tpu_custom_call.1} parent=1 // pred_check
      _
    $region39: #{tpu_custom_call.1} parent=1 // pred_check_branch
      %131 = sbr.rel (0) target = $region41
    $region40: #{tpu_custom_call.1} parent=1 // pred_region
      _
    $region41: #{tpu_custom_call.1} parent=1 // pred_fallthru
      _
    // Predicated region
    $region42: #{tpu_custom_call.1} parent=1 // pred_check
      _
    $region43: #{tpu_custom_call.1} parent=1 // pred_check_branch
      %133 = sbr.rel (0) target = $region45
    $region44: #{tpu_custom_call.1} parent=1 // pred_region
      %135 = vsyncadd [#allocation18], 0
      %s136 = sshll.u32 %s10, 4
      %s137 = int_to_ptr.hbm [resolvable:$true] %s136
      %s138 = sshll.u32 [#allocation17], 4
      %s139 = int_to_ptr.vmem [resolvable:$true] %s138
      %144 = dma.hbm_to_vmem [thread:$0]  %s137, 256, %s139, [#allocation18], 128, 128, 8
    $region45: #{tpu_custom_call.1} parent=1 // pred_fallthru
      _
    // Predicated region
    $region46: #{tpu_custom_call.1} parent=1 // pred_check
      _
    $region47: #{tpu_custom_call.1} parent=1 // pred_check_branch
      %146 = sbr.rel (0) target = $region49
    $region48: #{tpu_custom_call.1} parent=1 // pred_region
      _
    $region49: #{tpu_custom_call.1} parent=1 // pred_fallthru
      _
    // Predicated region
    $region50: #{tpu_custom_call.1} parent=1 // pred_check
      _
    $region51: #{tpu_custom_call.1} parent=1 // pred_check_branch
      %148 = sbr.rel (0) target = $region53
    $region52: #{tpu_custom_call.1} parent=1 // pred_region
      %150 = vsyncadd [#allocation18], 0
      %s151 = sshll.u32 %s12, 4
      %s152 = int_to_ptr.hbm [resolvable:$true] %s151
      %s153 = sshll.u32 [#allocation19], 4
      %s154 = int_to_ptr.vmem [resolvable:$true] %s153
      %159 = dma.hbm_to_vmem [thread:$0]  %s152, 8192, %s154, [#allocation18], 128, 128, 8
    $region53: #{tpu_custom_call.1} parent=1 // pred_fallthru
      _
    // Predicated region
    $region54: #{tpu_custom_call.1} parent=1 // pred_check
      _
    $region55: #{tpu_custom_call.1} parent=1 // pred_check_branch
      %161 = sbr.rel (0) target = $region57
    $region56: #{tpu_custom_call.1} parent=1 // pred_region
      %163 = dma.done [#allocation3], 128
    $region57: #{tpu_custom_call.1} parent=1 // pred_fallthru
      _
    // Predicated region
    $region58: #{tpu_custom_call.1} parent=1 // pred_check
      _
    $region59: #{tpu_custom_call.1} parent=1 // pred_check_branch
      %165 = sbr.rel (0) target = $region61
    $region60: #{tpu_custom_call.1} parent=1 // pred_region
      %167 = dma.done [#allocation6], 512
    $region61: #{tpu_custom_call.1} parent=1 // pred_fallthru
      _
    // Predicated region
    $region62: #{tpu_custom_call.1} parent=1 // pred_check
      _
    $region63: #{tpu_custom_call.1} parent=1 // pred_check_branch
      %169 = sbr.rel (0) target = $region65
    $region64: #{tpu_custom_call.1} parent=1 // pred_region
      %171 = dma.done [#allocation6], 16
    $region65: #{tpu_custom_call.1} parent=1 // pred_fallthru
      _
    // Predicated region
    $region66: #{tpu_custom_call.1} parent=1 // pred_check
      _
    $region67: #{tpu_custom_call.1} parent=1 // pred_check_branch
      %173 = sbr.rel (0) target = $region69
    $region68: #{tpu_custom_call.1} parent=1 // pred_region
      %175 = dma.done [#allocation9], 128
    $region69: #{tpu_custom_call.1} parent=1 // pred_fallthru
      _
    // Predicated region
    $region70: #{tpu_custom_call.1} parent=1 // pred_check
      _
    $region71: #{tpu_custom_call.1} parent=1 // pred_check_branch
      %177 = sbr.rel (0) target = $region73
    $region72: #{tpu_custom_call.1} parent=1 // pred_region
      %179 = dma.done [#allocation9], 1024
    $region73: #{tpu_custom_call.1} parent=1 // pred_fallthru
      _
    // Predicated region
    $region74: #{tpu_custom_call.1} parent=1 // pred_check
      _
    $region75: #{tpu_custom_call.1} parent=1 // pred_check_branch
      %181 = sbr.rel (0) target = $region77
    $region76: #{tpu_custom_call.1} parent=1 // pred_region
      %183 = dma.done [#allocation12], 16
    $region77: #{tpu_custom_call.1} parent=1 // pred_fallthru
      _
    // Predicated region
    $region78: #{tpu_custom_call.1} parent=1 // pred_check
      _
    $region79: #{tpu_custom_call.1} parent=1 // pred_check_branch
      %185 = sbr.rel (0) target = $region81
    $region80: #{tpu_custom_call.1} parent=1 // pred_region
      %187 = dma.done [#allocation12], 128
    $region81: #{tpu_custom_call.1} parent=1 // pred_fallthru
      _
    // Predicated region
    $region82: #{tpu_custom_call.1} parent=1 // pred_check
      _
    $region83: #{tpu_custom_call.1} parent=1 // pred_check_branch
      %189 = sbr.rel (0) target = $region85
    $region84: #{tpu_custom_call.1} parent=1 // pred_region
      %191 = dma.done [#allocation15], 768
    $region85: #{tpu_custom_call.1} parent=1 // pred_fallthru
      _
    // Predicated region
    $region86: #{tpu_custom_call.1} parent=1 // pred_check
      _
    $region87: #{tpu_custom_call.1} parent=1 // pred_check_branch
      %193 = sbr.rel (0) target = $region89
    $region88: #{tpu_custom_call.1} parent=1 // pred_region
      %195 = dma.done [#allocation15], 16
    $region89: #{tpu_custom_call.1} parent=1 // pred_fallthru
      _
    // Predicated region
    $region90: #{tpu_custom_call.1} parent=1 // pred_check
      _
    $region91: #{tpu_custom_call.1} parent=1 // pred_check_branch
      %197 = sbr.rel (0) target = $region93
    $region92: #{tpu_custom_call.1} parent=1 // pred_region
      %199 = dma.done [#allocation18], 256
    $region93: #{tpu_custom_call.1} parent=1 // pred_fallthru
      _
    // Predicated region
    $region94: #{tpu_custom_call.1} parent=1 // pred_check
      _
    $region95: #{tpu_custom_call.1} parent=1 // pred_check_branch
      %201 = sbr.rel (0) target = $region97
    $region96: #{tpu_custom_call.1} parent=1 // pred_region
      %203 = dma.done [#allocation18], 8192
    $region97: #{tpu_custom_call.1} parent=1 // pred_fallthru
      _
    %v204 = vld [vmem:[#allocation2] sm:$0xff]
    %v205 = vld [vmem:[#allocation5] sm:$0xff]
    %v206 = vld [vmem:[#allocation5 + $0x8] sm:$0xff]
    %v207 = vld [vmem:[#allocation5 + $0x10] sm:$0xff]
    %v208 = vld [vmem:[#allocation5 + $0x18] sm:$0xff]
    %v209 = vld [vmem:[#allocation7] sm:$0x1]
    %v211 = vperm.slane %v209, 0
    %vm213 = vcmask 261120
    %v215 = vsel %vm213, %v204, 0
    %217 = vmatpush.msra.mxu0 0.0
    %218 = vmatpush.msra.mxu0 0.0
    %219 = vmatpush.msra.mxu0 0.0
    %220 = vmatpush.msra.mxu0 0.0
    %221 = vmatpush.msra.mxu0 0.0
    %222 = vmatpush.msra.mxu0 0.0
    %223 = vmatpush.msra.mxu0 0.0
    %224 = vmatpush.msra.mxu0 0.0
    %225 = vmatpush.msra.mxu0 0.0
    %226 = vmatpush.msra.mxu0 0.0
    %227 = vmatpush.msra.mxu0 0.0
    %228 = vmatpush.msra.mxu0 0.0
    %229 = vmatpush.msra.mxu0 %v208
    %230 = vmatpush.msra.mxu0 %v207
    %231 = vmatpush.msra.mxu0 %v206
    %232 = vmatpush.msra.mxu0 %v205
    %233 = vmatmul.f32.gmra.mxu0 %v215
    %v234 = vpop.f32.mrf.mxu0
    %v235 = vadd.f32 %v211, %v234
    %236 = vdwg.mxu0
    %v237 = vmul.f32 %v235, %v235
    %238 = vadd.xlane.f32.xlu0 %v237
    %v239 = vpop.xlane.xlu0 %238
    %v240 = vmax.f32 %v239, 1e-24
    %v241 = vrsqrt.pop %v240
    %v242 = vmul.f32 %v241, %v240
    %v243 = vmul.f32 %v242, %v241
    %v244 = vmul.f32 0.5, %v243
    %v245 = vsub.f32 1.5, %v244
    %v246 = vmul.f32 %v241, %v245
    %vm247 = vweird.f32 %v240
    %vm248 = vweird.f32 %v241
    %vm249 = vmor %vm247, %vm248
    %v250 = vsel %vm249, %v241, %v246
    %v251 = vmul.f32 %v235, %v250
    %v252 = vld [vmem:[#allocation8] sm:$0xff]
    %v253 = vld [vmem:[#allocation10] sm:$0xff]
    %v254 = vld [vmem:[#allocation10 + $0x8] sm:$0xff]
    %v255 = vld [vmem:[#allocation10 + $0x10] sm:$0xff]
    %v256 = vld [vmem:[#allocation10 + $0x18] sm:$0xff]
    %v257 = vld [vmem:[#allocation10 + $0x20] sm:$0xff]
    %v258 = vld [vmem:[#allocation10 + $0x28] sm:$0xff]
    %v259 = vld [vmem:[#allocation10 + $0x30] sm:$0xff]
    %v260 = vld [vmem:[#allocation10 + $0x38] sm:$0xff]
    %v261 = vld [vmem:[#allocation11] sm:$0x1]
    %v263 = vperm.slane %v261, 0
    %vm265 = vcmask 523264
    %v267 = vsel %vm265, %v252, 0
    %269 = vmatpush.msra.mxu0 0.0
    %270 = vmatpush.msra.mxu0 0.0
    %271 = vmatpush.msra.mxu0 0.0
    %272 = vmatpush.msra.mxu0 0.0
    %273 = vmatpush.msra.mxu0 0.0
    %274 = vmatpush.msra.mxu0 0.0
    %275 = vmatpush.msra.mxu0 0.0
    %276 = vmatpush.msra.mxu0 0.0
    %277 = vmatpush.msra.mxu0 %v260
    %278 = vmatpush.msra.mxu0 %v259
    %279 = vmatpush.msra.mxu0 %v258
    %280 = vmatpush.msra.mxu0 %v257
    %281 = vmatpush.msra.mxu0 %v256
    %282 = vmatpush.msra.mxu0 %v255
    %283 = vmatpush.msra.mxu0 %v254
    %284 = vmatpush.msra.mxu0 %v253
    %285 = vmatmul.f32.gmra.mxu0 %v267
    %v286 = vpop.f32.mrf.mxu0
    %v287 = vadd.f32 %v263, %v286
    %288 = vdwg.mxu0
    %v289 = vmul.f32 %v287, %v287
    %290 = vadd.xlane.f32.xlu0 %v289
    %v291 = vpop.xlane.xlu0 %290
    %v292 = vmax.f32 %v291, 1e-24
    %v293 = vrsqrt.pop %v292
    %v294 = vmul.f32 %v293, %v292
    %v295 = vmul.f32 %v294, %v293
    %v296 = vmul.f32 0.5, %v295
    %v297 = vsub.f32 1.5, %v296
    %v298 = vmul.f32 %v293, %v297
    %vm299 = vweird.f32 %v292
    %vm300 = vweird.f32 %v293
    %vm301 = vmor %vm299, %vm300
    %v302 = vsel %vm301, %v293, %v298
    %v303 = vmul.f32 %v287, %v302
    %v304 = vld [vmem:[#allocation13] sm:$0xff]
    %v305 = vld [vmem:[#allocation14] sm:$0xff]
    %v306 = vld [vmem:[#allocation14 + $0x8] sm:$0xff]
    %v307 = vld [vmem:[#allocation14 + $0x10] sm:$0xff]
    %v308 = vld [vmem:[#allocation14 + $0x18] sm:$0xff]
    %v309 = vld [vmem:[#allocation14 + $0x20] sm:$0xff]
    %v310 = vld [vmem:[#allocation14 + $0x28] sm:$0xff]
    %v311 = vld [vmem:[#allocation16] sm:$0x1]
    %v313 = vperm.slane %v311, 0
    %vm315 = vcmask 392192
    %v317 = vsel %vm315, %v304, 0
    %319 = vmatpush.msra.mxu0 0.0
    %320 = vmatpush.msra.mxu0 0.0
    %321 = vmatpush.msra.mxu0 0.0
    %322 = vmatpush.msra.mxu0 0.0
    %323 = vmatpush.msra.mxu0 0.0
    %324 = vmatpush.msra.mxu0 0.0
    %325 = vmatpush.msra.mxu0 0.0
    %326 = vmatpush.msra.mxu0 0.0
    %327 = vmatpush.msra.mxu0 0.0
    %328 = vmatpush.msra.mxu0 0.0
    %329 = vmatpush.msra.mxu0 %v310
    %330 = vmatpush.msra.mxu0 %v309
    %331 = vmatpush.msra.mxu0 %v308
    %332 = vmatpush.msra.mxu0 %v307
    %333 = vmatpush.msra.mxu0 %v306
    %334 = vmatpush.msra.mxu0 %v305
    %335 = vmatmul.f32.gmra.mxu0 %v317
    %v336 = vpop.f32.mrf.mxu0
    %v337 = vadd.f32 %v313, %v336
    %338 = vdwg.mxu0
    %v339 = vmul.f32 %v337, %v337
    %340 = vadd.xlane.f32.xlu0 %v339
    %v341 = vpop.xlane.xlu0 %340
    %v342 = vmax.f32 %v341, 1e-24
    %v343 = vrsqrt.pop %v342
    %v344 = vmul.f32 %v343, %v342
    %v345 = vmul.f32 %v344, %v343
    %v346 = vmul.f32 0.5, %v345
    %v347 = vsub.f32 1.5, %v346
    %v348 = vmul.f32 %v343, %v347
    %vm349 = vweird.f32 %v342
    %vm350 = vweird.f32 %v343
    %vm351 = vmor %vm349, %vm350
    %v352 = vsel %vm351, %v343, %v348
    %v353 = vmul.f32 %v337, %v352
    %v354 = vld [vmem:[%s9] sm:$0xff]
    %v355 = vld [vmem:[#allocation17] sm:$0xff]
    %v356 = vld [vmem:[#allocation17 + $0x8] sm:$0xff]
    %v357 = vld [vmem:[%s11] sm:$0x1]
    %v359 = vperm.slane %v357, 0
    %vm361 = vcmask 130048
    %v363 = vsel %vm361, %v354, 0
    %365 = vmatpush.msra.mxu0 0.0
    %366 = vmatpush.msra.mxu0 0.0
    %367 = vmatpush.msra.mxu0 0.0
    %368 = vmatpush.msra.mxu0 0.0
    %369 = vmatpush.msra.mxu0 0.0
    %370 = vmatpush.msra.mxu0 0.0
    %371 = vmatpush.msra.mxu0 0.0
    %372 = vmatpush.msra.mxu0 0.0
    %373 = vmatpush.msra.mxu0 0.0
    %374 = vmatpush.msra.mxu0 0.0
    %375 = vmatpush.msra.mxu0 0.0
    %376 = vmatpush.msra.mxu0 0.0
    %377 = vmatpush.msra.mxu0 0.0
    %378 = vmatpush.msra.mxu0 0.0
    %379 = vmatpush.msra.mxu0 %v356
    %380 = vmatpush.msra.mxu0 %v355
    %381 = vmatmul.f32.gmra.mxu0 %v363
    %v382 = vpop.f32.mrf.mxu0
    %v383 = vadd.f32 %v359, %v382
    %384 = vdwg.mxu0
    %v385 = vmul.f32 %v383, %v383
    %386 = vadd.xlane.f32.xlu0 %v385
    %v387 = vpop.xlane.xlu0 %386
    %v388 = vmax.f32 %v387, 1e-24
    %v389 = vrsqrt.pop %v388
    %v390 = vmul.f32 %v389, %v388
    %v391 = vmul.f32 %v390, %v389
    %v392 = vmul.f32 0.5, %v391
    %v393 = vsub.f32 1.5, %v392
    %v394 = vmul.f32 %v389, %v393
    %vm395 = vweird.f32 %v388
    %vm396 = vweird.f32 %v389
    %vm397 = vmor %vm395, %vm396
    %v398 = vsel %vm397, %v389, %v394
    %v399 = vmul.f32 %v383, %v398
    %v400 = vmul.f32 %v251, %v353
    %v401 = vmul.f32 %v251, %v399
    %v402 = vmul.f32 %v303, %v353
    %v403 = vmul.f32 %v303, %v399
    %v404 = vld [vmem:[#allocation19] sm:$0xff]
    %v405 = vld [vmem:[#allocation19 + $0x8] sm:$0xff]
    %v406 = vld [vmem:[#allocation19 + $0x10] sm:$0xff]
    %v407 = vld [vmem:[#allocation19 + $0x18] sm:$0xff]
    %v408 = vld [vmem:[#allocation19 + $0x20] sm:$0xff]
    %v409 = vld [vmem:[#allocation19 + $0x28] sm:$0xff]
    %v410 = vld [vmem:[#allocation19 + $0x30] sm:$0xff]
    %v411 = vld [vmem:[#allocation19 + $0x38] sm:$0xff]
    %v412 = vld [vmem:[#allocation19 + $0x40] sm:$0xff]
    %v413 = vld [vmem:[#allocation19 + $0x48] sm:$0xff]
    %v414 = vld [vmem:[#allocation19 + $0x50] sm:$0xff]
    %v415 = vld [vmem:[#allocation19 + $0x58] sm:$0xff]
    %v416 = vld [vmem:[#allocation19 + $0x60] sm:$0xff]
    %v417 = vld [vmem:[#allocation19 + $0x68] sm:$0xff]
    %v418 = vld [vmem:[#allocation19 + $0x70] sm:$0xff]
    %v419 = vld [vmem:[#allocation19 + $0x78] sm:$0xff]
    %v420 = vld [vmem:[#allocation19 + $0x80] sm:$0xff]
    %v421 = vld [vmem:[#allocation19 + $0x88] sm:$0xff]
    %v422 = vld [vmem:[#allocation19 + $0x90] sm:$0xff]
    %v423 = vld [vmem:[#allocation19 + $0x98] sm:$0xff]
    %v424 = vld [vmem:[#allocation19 + $0xa0] sm:$0xff]
    %v425 = vld [vmem:[#allocation19 + $0xa8] sm:$0xff]
    %v426 = vld [vmem:[#allocation19 + $0xb0] sm:$0xff]
    %v427 = vld [vmem:[#allocation19 + $0xb8] sm:$0xff]
    %v428 = vld [vmem:[#allocation19 + $0xc0] sm:$0xff]
    %v429 = vld [vmem:[#allocation19 + $0xc8] sm:$0xff]
    %v430 = vld [vmem:[#allocation19 + $0xd0] sm:$0xff]
    %v431 = vld [vmem:[#allocation19 + $0xd8] sm:$0xff]
    %v432 = vld [vmem:[#allocation19 + $0xe0] sm:$0xff]
    %v433 = vld [vmem:[#allocation19 + $0xe8] sm:$0xff]
    %v434 = vld [vmem:[#allocation19 + $0xf0] sm:$0xff]
    %v435 = vld [vmem:[#allocation19 + $0xf8] sm:$0xff]
    %v436 = vld [vmem:[#allocation19 + $0x100] sm:$0xff]
    %v437 = vld [vmem:[#allocation19 + $0x108] sm:$0xff]
    %v438 = vld [vmem:[#allocation19 + $0x110] sm:$0xff]
    %v439 = vld [vmem:[#allocation19 + $0x118] sm:$0xff]
    %v440 = vld [vmem:[#allocation19 + $0x120] sm:$0xff]
    %v441 = vld [vmem:[#allocation19 + $0x128] sm:$0xff]
    %v442 = vld [vmem:[#allocation19 + $0x130] sm:$0xff]
    %v443 = vld [vmem:[#allocation19 + $0x138] sm:$0xff]
    %v444 = vld [vmem:[#allocation19 + $0x140] sm:$0xff]
    %v445 = vld [vmem:[#allocation19 + $0x148] sm:$0xff]
    %v446 = vld [vmem:[#allocation19 + $0x150] sm:$0xff]
    %v447 = vld [vmem:[#allocation19 + $0x158] sm:$0xff]
    %v448 = vld [vmem:[#allocation19 + $0x160] sm:$0xff]
    %v449 = vld [vmem:[#allocation19 + $0x168] sm:$0xff]
    %v450 = vld [vmem:[#allocation19 + $0x170] sm:$0xff]
    %v451 = vld [vmem:[#allocation19 + $0x178] sm:$0xff]
    %v452 = vld [vmem:[#allocation19 + $0x180] sm:$0xff]
    %v453 = vld [vmem:[#allocation19 + $0x188] sm:$0xff]
    %v454 = vld [vmem:[#allocation19 + $0x190] sm:$0xff]
    %v455 = vld [vmem:[#allocation19 + $0x198] sm:$0xff]
    %v456 = vld [vmem:[#allocation19 + $0x1a0] sm:$0xff]
    %v457 = vld [vmem:[#allocation19 + $0x1a8] sm:$0xff]
    %v458 = vld [vmem:[#allocation19 + $0x1b0] sm:$0xff]
    %v459 = vld [vmem:[#allocation19 + $0x1b8] sm:$0xff]
    %v460 = vld [vmem:[#allocation19 + $0x1c0] sm:$0xff]
    %v461 = vld [vmem:[#allocation19 + $0x1c8] sm:$0xff]
    %v462 = vld [vmem:[#allocation19 + $0x1d0] sm:$0xff]
    %v463 = vld [vmem:[#allocation19 + $0x1d8] sm:$0xff]
    %v464 = vld [vmem:[#allocation19 + $0x1e0] sm:$0xff]
    %v465 = vld [vmem:[#allocation19 + $0x1e8] sm:$0xff]
    %v466 = vld [vmem:[#allocation19 + $0x1f0] sm:$0xff]
    %v467 = vld [vmem:[#allocation19 + $0x1f8] sm:$0xff]
    %468 = vmatpush.msra.mxu0 %v419
    %469 = vmatpush.msra.mxu0 %v418
    %470 = vmatpush.msra.mxu0 %v417
    %471 = vmatpush.msra.mxu0 %v416
    %472 = vmatpush.msra.mxu0 %v415
    %473 = vmatpush.msra.mxu0 %v414
    %474 = vmatpush.msra.mxu0 %v413
    %475 = vmatpush.msra.mxu0 %v412
    %476 = vmatpush.msra.mxu0 %v411
    %477 = vmatpush.msra.mxu0 %v410
    %478 = vmatpush.msra.mxu0 %v409
    %479 = vmatpush.msra.mxu0 %v408
    %480 = vmatpush.msra.mxu0 %v407
    %481 = vmatpush.msra.mxu0 %v406
    %482 = vmatpush.msra.mxu0 %v405
    %483 = vmatpush.msra.mxu0 %v404
    %484 = vmatmul.f32.gmra.mxu0 %v400
    %v485 = vpop.f32.mrf.mxu0
    %v486 = vadd.f32 0.0, %v485
    %487 = vdwg.mxu0
    %488 = vmatpush.msra.mxu0 %v435
    %489 = vmatpush.msra.mxu0 %v434
    %490 = vmatpush.msra.mxu0 %v433
    %491 = vmatpush.msra.mxu0 %v432
    %492 = vmatpush.msra.mxu0 %v431
    %493 = vmatpush.msra.mxu0 %v430
    %494 = vmatpush.msra.mxu0 %v429
    %495 = vmatpush.msra.mxu0 %v428
    %496 = vmatpush.msra.mxu0 %v427
    %497 = vmatpush.msra.mxu0 %v426
    %498 = vmatpush.msra.mxu0 %v425
    %499 = vmatpush.msra.mxu0 %v424
    %500 = vmatpush.msra.mxu0 %v423
    %501 = vmatpush.msra.mxu0 %v422
    %502 = vmatpush.msra.mxu0 %v421
    %503 = vmatpush.msra.mxu0 %v420
    %504 = vmatmul.f32.gmra.mxu0 %v401
    %v505 = vpop.f32.mrf.mxu0
    %v506 = vadd.f32 %v486, %v505
    %507 = vdwg.mxu0
    %508 = vmatpush.msra.mxu0 %v451
    %509 = vmatpush.msra.mxu0 %v450
    %510 = vmatpush.msra.mxu0 %v449
    %511 = vmatpush.msra.mxu0 %v448
    %512 = vmatpush.msra.mxu0 %v447
    %513 = vmatpush.msra.mxu0 %v446
    %514 = vmatpush.msra.mxu0 %v445
    %515 = vmatpush.msra.mxu0 %v444
    %516 = vmatpush.msra.mxu0 %v443
    %517 = vmatpush.msra.mxu0 %v442
    %518 = vmatpush.msra.mxu0 %v441
    %519 = vmatpush.msra.mxu0 %v440
    %520 = vmatpush.msra.mxu0 %v439
    %521 = vmatpush.msra.mxu0 %v438
    %522 = vmatpush.msra.mxu0 %v437
    %523 = vmatpush.msra.mxu0 %v436
    %524 = vmatmul.f32.gmra.mxu0 %v402
    %v525 = vpop.f32.mrf.mxu0
    %v526 = vadd.f32 %v506, %v525
    %527 = vdwg.mxu0
    %528 = vmatpush.msra.mxu0 %v467
    %529 = vmatpush.msra.mxu0 %v466
    %530 = vmatpush.msra.mxu0 %v465
    %531 = vmatpush.msra.mxu0 %v464
    %532 = vmatpush.msra.mxu0 %v463
    %533 = vmatpush.msra.mxu0 %v462
    %534 = vmatpush.msra.mxu0 %v461
    %535 = vmatpush.msra.mxu0 %v460
    %536 = vmatpush.msra.mxu0 %v459
    %537 = vmatpush.msra.mxu0 %v458
    %538 = vmatpush.msra.mxu0 %v457
    %539 = vmatpush.msra.mxu0 %v456
    %540 = vmatpush.msra.mxu0 %v455
    %541 = vmatpush.msra.mxu0 %v454
    %542 = vmatpush.msra.mxu0 %v453
    %543 = vmatpush.msra.mxu0 %v452
    %544 = vmatmul.f32.gmra.mxu0 %v403
    %v545 = vpop.f32.mrf.mxu0
    %v546 = vadd.f32 %v526, %v545
    %547 = vdwg.mxu0
    %v548 = vxor.u32 %v546, 2147483648
    %v549 = vmul.f32 %v548, 1.442695
    %v550 = vpow.pop %v549
    %v551 = vadd.f32 %v550, 1.0
    %v552 = vrcp.pop %v551
    %v553 = vmul.f32 %v551, %v552
    %v554 = vsub.f32 1.0, %v553
    %v555 = vmul.f32 %v552, %v554
    %v556 = vadd.f32 %v552, %v555
    %vm557 = vweird.f32 %v551
    %vm558 = vweird.f32 %v552
    %vm559 = vmor %vm557, %vm558
    %v560 = vsel %vm559, %v552, %v556
    %v561 = vand.u32 2147483647, %v551
    %vm562 = vcmp.eq.f32.partialorder %v561, 8.507059e+37
    %v563 = vand.u32 %v551, 2147483648
    %v564 = vor.u32 1.1754944e-38, %v563
    %v565 = vsel %vm562, %v564, %v560
    %v566 = vmul.f32 1.0, %v565
    %567 = vst [vmem:[#allocation20] sm:$0xff] %v566
    // Predicated region
    $region98: #{tpu_custom_call.1} parent=1 // pred_check
      _
    $region99: #{tpu_custom_call.1} parent=1 // pred_check_branch
      %569 = sbr.rel (0) target = $region101
    $region100: #{tpu_custom_call.1} parent=1 // pred_region
      %571 = vsyncadd [#allocation4], 0
      %s573 = sshll.u32 [#allocation20], 4
      %s574 = int_to_ptr.vmem [resolvable:$true] %s573
      %s575 = sshll.u32 %s13, 4
      %s576 = int_to_ptr.hbm [resolvable:$true] %s575
      %578 = dma.vmem_to_hbm [thread:$0]  %s574, 128, %s576, [#allocation4]
    $region101: #{tpu_custom_call.1} parent=1 // pred_fallthru
      _
    // Predicated region
    $region102: #{tpu_custom_call.1} parent=1 // pred_check
      _
    $region103: #{tpu_custom_call.1} parent=1 // pred_check_branch
      %580 = sbr.rel (0) target = $region105
    $region104: #{tpu_custom_call.1} parent=1 // pred_region
      %582 = dma.done [#allocation4], 128
    $region105: #{tpu_custom_call.1} parent=1 // pred_fallthru
      _
    %583 = vsyncpa [#allocation3], 1
    %584 = vsyncpa [#allocation6], 1
    %585 = vsyncpa [#allocation9], 1
    %586 = vsyncpa [#allocation12], 1
    %587 = vsyncpa [#allocation15], 1
    %588 = vsyncpa [#allocation18], 1
    %589 = vsyncpa [#allocation4], 1

</llo_original>
